<compile_context>
chip_gen: v6e
topology: v6e:2x2x1
jax: 0.10.0
libtpu: 0.0.40
codegen_flags: <defaults>
</compile_context>

<pallas_src>
import jax
import jax.numpy as jnp
from jax import lax
from jax.experimental import pallas as pl
from jax.experimental.pallas import tpu as pltpu

_LANE = 128  # lane width (last-dim granule)


def _round_up(n, m):
    return ((n + m - 1) // m) * m


def _vmem_budget_bytes():
    """One VMEM knob shared by tile sizing and Mosaic's scoped-VMEM limit.

    ~5/8 of physical VMEM leaves headroom for Mosaic internals:
    v7x (64 MiB/TC) -> 40 MiB, v5e/v6e (128 MiB) -> 80 MiB.
    """
    try:
        cap = int(pltpu.get_tpu_info().vmem_capacity_bytes)
    except Exception:
        cap = 64 * 1024 * 1024  # conservative fallback (v7x per-core)
    return int(min((cap * 5) // 8, 96 * 1024 * 1024))


def _linear_kernel(x_ref, w_ref, b_ref, o_ref):
    # In-kernel bf16 cast of the activation tile: avoids a separate
    # wrapper-side XLA cast pass over x in HBM; the cast itself is free VPU
    # filler in this mem-bound kernel.
    x_bf = x_ref[...].astype(jnp.bfloat16)
    # (TM, H) bf16 @ (H, Cpad) bf16 -> f32 accumulate on the MXU.
    acc = jnp.dot(x_bf, w_ref[...], preferred_element_type=jnp.float32)
    # Epilogue in f32: broadcasted bias add + final cast.
    o_ref[...] = (acc + b_ref[...]).astype(o_ref.dtype)


def pallas_linear(x, w, b, *, tm_max=1024, fast_path_flops=10_000_000,
                  vmem_budget_bytes=None):
    """y = x @ w + b on-TPU via Pallas (bf16 MXU inputs, f32 accumulate)."""
    B, H = x.shape
    H2, C = w.shape
    assert H == H2 and b.shape == (C,)
    out_dtype = x.dtype
    x_itemsize = jnp.dtype(x.dtype).itemsize
    out_itemsize = jnp.dtype(out_dtype).itemsize

    # Lane-dense output: pad num_classes to a multiple of 128 (store path only;
    # do NOT widen further to "fill" the MXU -- the kernel is HBM-bound).
    Cpad = _round_up(C, _LANE)

    # Tiny classifier head: pallas_call fixed cost (grid setup, DMA round trip,
    # the class-dim slice) dwarfs the work; let XLA fuse dot+bias with x's
    # producer instead.
    if 2 * B * H * Cpad < fast_path_flops:
        return (jnp.dot(x, w) + b).astype(out_dtype)

    if vmem_budget_bytes is None:
        vmem_budget_bytes = _vmem_budget_bytes()

    # Sublane granule for the batch-tile dim (f32 blocks: 8 rows, bf16: 16).
    sub = 8 if x_itemsize >= 4 else 16

    # Batch tile: at most ceil(B/2) so the grid has >= 2 steps and the
    # "parallel" axis can shard across v7x's two TensorCores (and the pipeline
    # can overlap DMA with compute); capped by tm_max and the VMEM budget.
    tm = min(tm_max, _round_up(max(pl.cdiv(B, 2), sub), sub))

    def _vmem_bytes(t):
        # Default pipelining double-buffers every input, including the
        # grid-invariant w/b blocks, so count them at 2x.
        return (2 * t * H * x_itemsize        # x tiles (native dtype)
                + 2 * t * Cpad * out_itemsize  # out tiles
                + 2 * H * Cpad * 2             # weight (bf16)
                + 2 * Cpad * 4)                # bias (f32)

    while tm > sub and _vmem_bytes(tm) > vmem_budget_bytes:
        tm //= 2
    tm = max(sub, (tm // sub) * sub)

    grid = (pl.cdiv(B, tm),)  # no batch padding; edge block is masked on store

    # One-time parameter prep (tiny; constant-folded for params under jit).
    # TODO(synk): bf16 weights deviate slightly from PyTorch's f32 nn.Linear;
    # accumulation stays f32, checked below against a bf16-input reference.
    w_p = w.astype(jnp.bfloat16)
    b_p = b.astype(jnp.float32).reshape(1, C)
    if Cpad != C:
        w_p = jnp.pad(w_p, ((0, 0), (0, Cpad - C)))
        b_p = jnp.pad(b_p, ((0, 0), (0, Cpad - C)))

    y_pad = pl.pallas_call(
        _linear_kernel,
        out_shape=jax.ShapeDtypeStruct((B, Cpad), out_dtype),
        grid_spec=pl.GridSpec(
            grid=grid,
            in_specs=[
                pl.BlockSpec((tm, H), lambda i: (i, 0)),     # x: tiled over batch
                pl.BlockSpec((H, Cpad), lambda i: (0, 0)),   # w: grid-invariant
                pl.BlockSpec((1, Cpad), lambda i: (0, 0)),   # b: grid-invariant
            ],
            out_specs=pl.BlockSpec((tm, Cpad), lambda i: (i, 0)),
        ),
        compiler_params=pltpu.CompilerParams(
            dimension_semantics=("parallel",),        # megacore sharding on v7x
            vmem_limit_bytes=int(vmem_budget_bytes),  # same knob as tile sizing
        ),
        cost_estimate=pl.CostEstimate(
            flops=2 * B * H * Cpad,
            transcendentals=0,
            bytes_accessed=(B * H * x_itemsize + H * Cpad * 2
                            + Cpad * 4 + B * Cpad * out_itemsize),
        ),
    )(x, w_p, b_p)

    # Slice only the padded class dim (and only when padding was needed).
    return y_pad if Cpad == C else y_pad[:, :C]


def return_feature_layer(x, w, b):
    """Equivalent of ReturnFeatureLayer(nn.Linear(H, C)).forward(x)."""
    # TODO(synk): `self.mod` is arbitrary in the original module; only the
    # nn.Linear classifier case used by get_dataset_api is lowered here.
    y = pallas_linear(x, w, b)
    return (y, x)  # (self.mod(x), x)


if __name__ == "__main__":
    root = jax.random.PRNGKey(0)
    k_small, k_big = jax.random.split(root)

    def make_inputs(key, B, H, C):
        kx, kw, kb = jax.random.split(key, 3)
        x = jax.random.normal(kx, (B, H), dtype=jnp.float32)
        # Deterministic Linear-style init (uniform in +-1/sqrt(H), like PyTorch).
        bound = 1.0 / jnp.sqrt(jnp.float32(H))
        w = jax.random.uniform(kw, (H, C), dtype=jnp.float32,
                               minval=-bound, maxval=bound)
        b = jax.random.uniform(kb, (C,), dtype=jnp.float32,
                               minval=-bound, maxval=bound)
        return x, w, b

    # --- Case 1: tiny classifier head (batch=8, hidden=128, classes=32) ------
    # Takes the fused XLA fast path (Pallas fixed cost would dominate here).
    x1, w1, b1 = make_inputs(k_small, 8, 128, 32)
    y1, f1 = return_feature_layer(x1, w1, b1)
    jax.block_until_ready((y1, f1))
    assert y1.shape == (8, 32) and f1.shape == (8, 128)
    assert jnp.allclose(y1, x1 @ w1 + b1, atol=1e-3, rtol=1e-3)
    assert jnp.array_equal(f1, x1)

    # --- Case 2: Pallas path (batch=512 -> >=2 grid steps, both v7x TCs) -----
    B, H, C = 512, 128, 32
    x2, w2, b2 = make_inputs(k_big, B, H, C)
    y2, f2 = return_feature_layer(x2, w2, b2)
    jax.block_until_ready((y2, f2))
    assert y2.shape == (B, C) and f2.shape == (B, H)

    # Tight check against a bf16-input / f32-accumulate reference (matches the
    # kernel's MXU arithmetic).
    y2_bf16_ref = (x2.astype(jnp.bfloat16).astype(jnp.float32)
                   @ w2.astype(jnp.bfloat16).astype(jnp.float32)) + b2
    assert jnp.allclose(y2, y2_bf16_ref, atol=1e-3, rtol=1e-3)

    # Loose check against the full-precision reference (bf16 rounding only).
    y2_ref = jnp.dot(x2, w2, precision=lax.Precision.HIGHEST) + b2
    assert jnp.allclose(y2, y2_ref, atol=5e-2, rtol=5e-2)

    # Identity passthrough of the feature tensor.
    assert jnp.array_equal(f2, x2)

    print("KERNEL_OK")
</pallas_src>

<mosaic_0001>
module attributes {stable_mosaic.version = 11 : i64} {
  func.func @_linear_kernel(%arg0: i32, %arg1: memref<256x128xf32, #tpu.memory_space<vmem>>, %arg2: memref<128x128xbf16, #tpu.memory_space<vmem>>, %arg3: memref<1x128xf32, #tpu.memory_space<vmem>>, %arg4: memref<256x128xf32, #tpu.memory_space<vmem>>) attributes {dimension_semantics = [#tpu.dimension_semantics<parallel>], iteration_bounds = array<i64: 2>, scalar_prefetch = 0 : i64, scratch_operands = 0 : i64, tpu.core_type = #tpu.core_type<tc>, window_params = [{transform_indices = @transform_0, window_bounds = array<i64: 256, 128>}, {pipeline_mode = #tpu.pipeline_mode<synchronous>, transform_indices = @transform_1, window_bounds = array<i64: 128, 128>}, {pipeline_mode = #tpu.pipeline_mode<synchronous>, transform_indices = @transform_2, window_bounds = array<i64: 1, 128>}, {transform_indices = @transform_3, window_bounds = array<i64: 256, 128>}]} {
    %c0 = arith.constant 0 : index
    %c0_0 = arith.constant 0 : index
    %0 = vector.load %arg1[%c0, %c0_0] : memref<256x128xf32, #tpu.memory_space<vmem>>, vector<256x128xf32>
    %1 = arith.truncf %0 : vector<256x128xf32> to vector<256x128xbf16>
    %c0_1 = arith.constant 0 : index
    %c0_2 = arith.constant 0 : index
    %2 = vector.load %arg2[%c0_1, %c0_2] : memref<128x128xbf16, #tpu.memory_space<vmem>>, vector<128x128xbf16>
    %cst = arith.constant dense<0.000000e+00> : vector<256x128xf32>
    %3 = tpu.matmul %1, %2, %cst {dimension_numbers = #tpu.dot_dimension_numbers<[1], [0], [0], [1], [0, 0, 1, 1], [], []>} : vector<256x128xbf16>, vector<128x128xbf16>, vector<256x128xf32> -> vector<256x128xf32>
    %c0_3 = arith.constant 0 : index
    %c0_4 = arith.constant 0 : index
    %4 = vector.load %arg3[%c0_3, %c0_4] : memref<1x128xf32, #tpu.memory_space<vmem>>, vector<1x128xf32>
    %5 = vector.broadcast %4 : vector<1x128xf32> to vector<256x128xf32>
    %6 = arith.addf %3, %5 : vector<256x128xf32>
    %c0_5 = arith.constant 0 : index
    %c0_6 = arith.constant 0 : index
    %7 = vector.load %arg4[%c0_5, %c0_6] : memref<256x128xf32, #tpu.memory_space<vmem>>, vector<256x128xf32>
    tpu.vector_store %arg4[%c0_5, %c0_6], %6 {strides = array<i32>} : memref<256x128xf32, #tpu.memory_space<vmem>>, vector<256x128xf32>,
    return
  }
  func.func @transform_0(%arg0: i32) -> (i32, i32) {
    %c0_i32 = arith.constant 0 : i32
    %c0_i32_0 = arith.constant 0 : i32
    return %arg0, %c0_i32 : i32, i32
  }
  func.func @transform_1(%arg0: i32) -> (i32, i32) {
    %c0_i32 = arith.constant 0 : i32
    %c0_i32_0 = arith.constant 0 : i32
    %c0_i32_1 = arith.constant 0 : i32
    return %c0_i32, %c0_i32_0 : i32, i32
  }
  func.func @transform_2(%arg0: i32) -> (i32, i32) {
    %c0_i32 = arith.constant 0 : i32
    %c0_i32_0 = arith.constant 0 : i32
    %c0_i32_1 = arith.constant 0 : i32
    return %c0_i32, %c0_i32_0 : i32, i32
  }
  func.func @transform_3(%arg0: i32) -> (i32, i32) {
    %c0_i32 = arith.constant 0 : i32
    %c0_i32_0 = arith.constant 0 : i32
    return %arg0, %c0_i32 : i32, i32
  }
}

</mosaic_0001>

<llo_original>
// kernel: tpu_custom_call.1
$region0: #{tpu_custom_call.1}
  #allocation0 [shape = 'u32[]', space=smem, size = 0x4, offset = 0x4, fixed_abs, tag = 'smem constant byte address 0x4 - core index']
  #allocation1 [shape = 'u32[144,128]{1,0:T(1,128)}', space=vmem, size = 0x12000, scoped, tag = 'internal scratch']
  %s0 = inlined_call_operand.hbm [shape: f32[512,128], index: 0, kind: input, shape index: {}]
  %s1 = inlined_call_operand.hbm [shape: bf16[128,128], index: 1, kind: input, shape index: {}]
  %s2 = inlined_call_operand.vmem [shape: f32[1,128], index: 2, kind: input, shape index: {}]
  %s3 = inlined_call_operand.hbm [shape: f32[512,128], index: 3, kind: output, shape index: {}]
  %s4 = sld [smem:[#allocation0]]
  $region53: #{tpu_custom_call.1} parent=0
    _
  %s6 = ssub.s32 1, %s4
  %s7 = scalar_select 0, %s6, %s4
  $region1: #{tpu_custom_call.1} parent=0
    #allocation2 [shape = 'u8[262144]{0}', space=vmem, size = 0x40000, scoped, tag = 'input window, operand 0']
    #allocation3 [shape = 's32[2]{0}', space=sflag, size = 0x8, scoped, tag = 'scoped memory for tpu_custom_call.1']
    #allocation4 [shape = 's32[2]{0}', space=sflag, size = 0x8, scoped, tag = 'scoped memory for tpu_custom_call.1']
    #allocation5 [shape = 'u8[32768]{0}', space=vmem, size = 0x8000, scoped, tag = 'input window, operand 1, single buffered']
    #allocation6 [shape = 's32[1]{0}', space=sflag, size = 0x4, scoped, tag = 'scoped memory for tpu_custom_call.1']
    #allocation7 [shape = 'u8[262144]{0}', space=vmem, size = 0x40000, scoped, tag = 'output window, operand 0']
    %8 = vsyncpa [#allocation3], 0
    %s9 = scalar_lea.sflag [#allocation3], 1
    %10 = vsyncpa %s9, 0
    %11 = vsyncpa [#allocation6], 0
    %12 = vsyncpa [#allocation4], 0
    %s13 = scalar_lea.sflag [#allocation4], 1
    %14 = vsyncpa %s13, 0
    loop: start=0, step=1, limit=4
    $region2: #{tpu_custom_call.1} parent=1 // loop_pre_header
      _
    $region3: #{tpu_custom_call.1} parent=1 // loop_header
      %s16 = sphi 0, %s20
      %p17 = scmp.ge.s32.totalorder %s16, 4
      %s26 = sphi 0, %s28
      %s29 = sphi 0, %s26
      %s30 = sphi 0, %s29
      %s46 = sphi 0, %s30
      %s50 = sphi 0, %s50
      %s52 = sphi 0, %s50
      %s53 = sphi 0, %s52
      %s67 = sphi 0, %s53
      %s71 = sphi 0, %s71
      %s73 = sphi 0, %s71
      %s74 = sphi 0, %s73
      %s88 = sphi 0, %s74
      %s94 = sphi 0, %s96
      %s97 = sphi 0, %s94
      %s98 = sphi 0, %s97
      %s114 = sphi 0, %s98
    $region4: #{tpu_custom_call.1} parent=1 // loop_header_branch
      %19 = sbr.rel (%p17) target = $region8
    $region5: #{tpu_custom_call.1} parent=1 // loop_body
      %s21 = ssub.s32 %s16, 1
      %s22 = ssub.s32 %s16, 2
      %s23 = sadd.s32 %s16, 1
      %s24 = ssub.s32 %s16, %s23
      %p25 = scmp.eq.s32.totalorder %s24, 0
      %s27 = sadd.s32 %s26, 1
      %s28 = scalar_select %p25, %s26, %s27
      %p31 = pneg %p25
      %p32 = scmp.eq.s32.totalorder %s16, 1
      %p33 = por %p31, %p32
      %p34 = scmp.ne.s32.totalorder %s26, %s29
      %p35 = scmp.eq.s32.totalorder %s16, 0
      %p36 = por %p34, %p35
      %p37 = scmp.ne.s32.totalorder %s26, %s29
      %p38 = scmp.eq.s32.totalorder %s21, 1
      %p39 = por %p37, %p38
      %p40 = scmp.ne.s32.totalorder %s29, %s30
      %p41 = scmp.eq.s32.totalorder %s21, 0
      %p42 = por %p40, %p41
      %p43 = scmp.ne.s32.totalorder %s29, %s30
      %p44 = scmp.eq.s32.totalorder %s22, 1
      %p45 = por %p43, %p44
      %p47 = scmp.ne.s32.totalorder %s30, %s46
      %p48 = scmp.eq.s32.totalorder %s22, 0
      %p49 = por %p47, %p48
      %s51 = sadd.s32 %s50, 1
      %p54 = scmp.eq.s32.totalorder %s16, 1
      %p55 = scmp.ne.s32.totalorder %s50, %s52
      %p56 = scmp.eq.s32.totalorder %s16, 0
      %p57 = por %p55, %p56
      %p58 = scmp.ne.s32.totalorder %s50, %s52
      %p59 = scmp.eq.s32.totalorder %s21, 1
      %p60 = por %p58, %p59
      %p61 = scmp.ne.s32.totalorder %s52, %s53
      %p62 = scmp.eq.s32.totalorder %s21, 0
      %p63 = por %p61, %p62
      %p64 = scmp.ne.s32.totalorder %s52, %s53
      %p65 = scmp.eq.s32.totalorder %s22, 1
      %p66 = por %p64, %p65
      %p68 = scmp.ne.s32.totalorder %s53, %s67
      %p69 = scmp.eq.s32.totalorder %s22, 0
      %p70 = por %p68, %p69
      %s72 = sadd.s32 %s71, 1
      %p75 = scmp.eq.s32.totalorder %s16, 1
      %p76 = scmp.ne.s32.totalorder %s71, %s73
      %p77 = scmp.eq.s32.totalorder %s16, 0
      %p78 = por %p76, %p77
      %p79 = scmp.ne.s32.totalorder %s71, %s73
      %p80 = scmp.eq.s32.totalorder %s21, 1
      %p81 = por %p79, %p80
      %p82 = scmp.ne.s32.totalorder %s73, %s74
      %p83 = scmp.eq.s32.totalorder %s21, 0
      %p84 = por %p82, %p83
      %p85 = scmp.ne.s32.totalorder %s73, %s74
      %p86 = scmp.eq.s32.totalorder %s22, 1
      %p87 = por %p85, %p86
      %p89 = scmp.ne.s32.totalorder %s74, %s88
      %p90 = scmp.eq.s32.totalorder %s22, 0
      %p91 = por %p89, %p90
      %s92 = ssub.s32 %s16, %s23
      %p93 = scmp.eq.s32.totalorder %s92, 0
      %s95 = sadd.s32 %s94, 1
      %s96 = scalar_select %p93, %s94, %s95
      %p99 = pneg %p93
      %p100 = scmp.eq.s32.totalorder %s16, 1
      %p101 = por %p99, %p100
      %p102 = scmp.ne.s32.totalorder %s94, %s97
      %p103 = scmp.eq.s32.totalorder %s16, 0
      %p104 = por %p102, %p103
      %p105 = scmp.ne.s32.totalorder %s94, %s97
      %p106 = scmp.eq.s32.totalorder %s21, 1
      %p107 = por %p105, %p106
      %p108 = scmp.ne.s32.totalorder %s97, %s98
      %p109 = scmp.eq.s32.totalorder %s21, 0
      %p110 = por %p108, %p109
      %p111 = scmp.ne.s32.totalorder %s97, %s98
      %p112 = scmp.eq.s32.totalorder %s22, 1
      %p113 = por %p111, %p112
      %p115 = scmp.ne.s32.totalorder %s98, %s114
      %p116 = scmp.eq.s32.totalorder %s22, 0
      %p117 = por %p115, %p116
      %p118 = scmp.le.s32.totalorder 1, %s16
      %p119 = scmp.lt.s32.totalorder %s16, 3
      %p120 = pnand %p118, %p119
      %p121 = pneg %p120
      // Predicated region
      $region9: #{tpu_custom_call.1} parent=5 // pred_check
        _
      $region10: #{tpu_custom_call.1} parent=5 // pred_check_branch
        %123 = sbr.rel (%p120) target = $region12
      $region11: #{tpu_custom_call.1} parent=5 // pred_region
        %s124 = ssub.s32 %s16, 1
        // Predicated region
        $region13: #{tpu_custom_call.1} parent=11 // pred_check
          %p125 = pneg %p63
        $region14: #{tpu_custom_call.1} parent=11 // pred_check_branch
          %127 = sbr.rel (%p125) target = $region16
        $region15: #{tpu_custom_call.1} parent=11 // pred_region
          %s129 = ssub.s32 1024, 1024
          %130 = vsyncadd [#allocation6], %s129
          %s131 = sshll.u32 [#allocation5], 4
          %s132 = int_to_ptr.vmem [resolvable:$true] %s131
          %137 = dma.hbm_to_vmem [thread:$0]  %s1, 1024, %s132, [#allocation6], 64, 64, 4
        $region16: #{tpu_custom_call.1} parent=11 // pred_fallthru
          _
        // Predicated region
        $region17: #{tpu_custom_call.1} parent=11 // pred_check
          %p138 = pneg %p84
        $region18: #{tpu_custom_call.1} parent=11 // pred_check_branch
          %140 = sbr.rel (%p138) target = $region20
        $region19: #{tpu_custom_call.1} parent=11 // pred_region
          _
        $region20: #{tpu_custom_call.1} parent=11 // pred_fallthru
          _
      $region12: #{tpu_custom_call.1} parent=5 // pred_fallthru
        _
      %p141 = scmp.lt.s32.totalorder %s16, 2
      // Predicated region
      $region21: #{tpu_custom_call.1} parent=5 // pred_check
        %p142 = pneg %p141
      $region22: #{tpu_custom_call.1} parent=5 // pred_check_branch
        %144 = sbr.rel (%p142) target = $region24
      $region23: #{tpu_custom_call.1} parent=5 // pred_region
        // Predicated region
        $region25: #{tpu_custom_call.1} parent=23 // pred_check
          %p145 = pneg %p36
        $region26: #{tpu_custom_call.1} parent=23 // pred_check_branch
          %147 = sbr.rel (%p145) target = $region28
        $region27: #{tpu_custom_call.1} parent=23 // pred_region
          %s148 = sand.u32 %s26, 1
          %s149 = scalar_lea.sflag [#allocation3], %s148
          %s150 = sand.u32 %s26, 1
          %s151 = smul.addr %s150, 256
          %s152 = scalar_lea.vmem [#allocation2], %s151
          %s153 = smul.u32 32, %s16
          %s155 = ssub.s32 4096, 4096
          %156 = vsyncadd %s149, %s155
          %s157 = smul.addr %s153, 128
          %s158 = scalar_lea.hbm %s0, %s157
          %s159 = sshll.u32 %s152, 4
          %s160 = int_to_ptr.vmem [resolvable:$true] %s159
          %165 = dma.hbm_to_vmem [thread:$0]  %s158, 4096, %s160, %s149, 128, 128, 8
        $region28: #{tpu_custom_call.1} parent=23 // pred_fallthru
          _
      $region24: #{tpu_custom_call.1} parent=5 // pred_fallthru
        _
      %p166 = scmp.le.s32.totalorder 1, %s16
      %p167 = scmp.lt.s32.totalorder %s16, 3
      %p168 = pnand %p166, %p167
      %p169 = pneg %p168
      // Predicated region
      $region29: #{tpu_custom_call.1} parent=5 // pred_check
        _
      $region30: #{tpu_custom_call.1} parent=5 // pred_check_branch
        %171 = sbr.rel (%p168) target = $region32
      $region31: #{tpu_custom_call.1} parent=5 // pred_region
        %s172 = ssub.s32 %s16, 1
        %s173 = sand.u32 %s29, 1
        %s174 = scalar_lea.sflag [#allocation3], %s173
        %s175 = sand.u32 %s29, 1
        %s176 = smul.addr %s175, 256
        %s177 = scalar_lea.vmem [#allocation2], %s176
        // Predicated region
        $region33: #{tpu_custom_call.1} parent=31 // pred_check
          %p178 = pneg %p42
        $region34: #{tpu_custom_call.1} parent=31 // pred_check_branch
          %180 = sbr.rel (%p178) target = $region36
        $region35: #{tpu_custom_call.1} parent=31 // pred_region
          %181 = dma.done %s174, 4096
        $region36: #{tpu_custom_call.1} parent=31 // pred_fallthru
          _
        // Predicated region
        $region37: #{tpu_custom_call.1} parent=31 // pred_check
          %p182 = pneg %p63
        $region38: #{tpu_custom_call.1} parent=31 // pred_check_branch
          %184 = sbr.rel (%p182) target = $region40
        $region39: #{tpu_custom_call.1} parent=31 // pred_region
          %185 = dma.done [#allocation6], 1024
        $region40: #{tpu_custom_call.1} parent=31 // pred_fallthru
          _
        %s186 = sand.u32 %s29, 1
        %s187 = scalar_lea.sflag [#allocation3], %s186
        %s188 = sand.u32 %s29, 1
        %s189 = smul.addr %s188, 256
        %s190 = scalar_lea.vmem [#allocation2], %s189
        %p191 = pneg %p42
        %p192 = pneg %p39
        %p193 = pneg %p63
        %p194 = pneg %p60
        %p195 = pneg %p84
        %p196 = pneg %p81
        %p197 = pneg %p110
        %p198 = pneg %p107
        %s199 = sand.u32 %s97, 1
        %s200 = scalar_lea.sflag [#allocation4], %s199
        %s201 = sand.u32 %s97, 1
        %s202 = smul.addr %s201, 256
        %s203 = scalar_lea.vmem [#allocation7], %s202
        %s204 = smul.u32 32, %s21
        %s205 = smul.u32 32, %s21
        %v207 = vld [vmem:[%s177] sm:$0xff]
        %v208 = vld [vmem:[%s177 + $0x8] sm:$0xff]
        %v209 = vld [vmem:[%s177 + $0x10] sm:$0xff]
        %v210 = vld [vmem:[%s177 + $0x18] sm:$0xff]
        %v211 = vld [vmem:[%s177 + $0x20] sm:$0xff]
        %v212 = vld [vmem:[%s177 + $0x28] sm:$0xff]
        %v213 = vld [vmem:[%s177 + $0x30] sm:$0xff]
        %v214 = vld [vmem:[%s177 + $0x38] sm:$0xff]
        %v215 = vld [vmem:[%s177 + $0x40] sm:$0xff]
        %v216 = vld [vmem:[%s177 + $0x48] sm:$0xff]
        %v217 = vld [vmem:[%s177 + $0x50] sm:$0xff]
        %v218 = vld [vmem:[%s177 + $0x58] sm:$0xff]
        %v219 = vld [vmem:[%s177 + $0x60] sm:$0xff]
        %v220 = vld [vmem:[%s177 + $0x68] sm:$0xff]
        %v221 = vld [vmem:[%s177 + $0x70] sm:$0xff]
        %v222 = vld [vmem:[%s177 + $0x78] sm:$0xff]
        %v223 = vld [vmem:[%s177 + $0x80] sm:$0xff]
        %v224 = vld [vmem:[%s177 + $0x88] sm:$0xff]
        %v225 = vld [vmem:[%s177 + $0x90] sm:$0xff]
        %v226 = vld [vmem:[%s177 + $0x98] sm:$0xff]
        %v227 = vld [vmem:[%s177 + $0xa0] sm:$0xff]
        %v228 = vld [vmem:[%s177 + $0xa8] sm:$0xff]
        %v229 = vld [vmem:[%s177 + $0xb0] sm:$0xff]
        %v230 = vld [vmem:[%s177 + $0xb8] sm:$0xff]
        %v231 = vld [vmem:[%s177 + $0xc0] sm:$0xff]
        %v232 = vld [vmem:[%s177 + $0xc8] sm:$0xff]
        %v233 = vld [vmem:[%s177 + $0xd0] sm:$0xff]
        %v234 = vld [vmem:[%s177 + $0xd8] sm:$0xff]
        %v235 = vld [vmem:[%s177 + $0xe0] sm:$0xff]
        %v236 = vld [vmem:[%s177 + $0xe8] sm:$0xff]
        %v237 = vld [vmem:[%s177 + $0xf0] sm:$0xff]
        %v238 = vld [vmem:[%s177 + $0xf8] sm:$0xff]
        %v239 = vpack.c.bf16 %v208, %v207
        %v240 = vpack.c.bf16 %v210, %v209
        %v241 = vpack.c.bf16 %v212, %v211
        %v242 = vpack.c.bf16 %v214, %v213
        %v243 = vpack.c.bf16 %v216, %v215
        %v244 = vpack.c.bf16 %v218, %v217
        %v245 = vpack.c.bf16 %v220, %v219
        %v246 = vpack.c.bf16 %v222, %v221
        %v247 = vpack.c.bf16 %v224, %v223
        %v248 = vpack.c.bf16 %v226, %v225
        %v249 = vpack.c.bf16 %v228, %v227
        %v250 = vpack.c.bf16 %v230, %v229
        %v251 = vpack.c.bf16 %v232, %v231
        %v252 = vpack.c.bf16 %v234, %v233
        %v253 = vpack.c.bf16 %v236, %v235
        %v254 = vpack.c.bf16 %v238, %v237
        %v255 = vld [vmem:[#allocation5] sm:$0xf]
        %v256 = vld [vmem:[#allocation5 + $0x4] sm:$0xf]
        %v257 = vld [vmem:[#allocation5 + $0x8] sm:$0xf]
        %v258 = vld [vmem:[#allocation5 + $0xc] sm:$0xf]
        %v259 = vld [vmem:[#allocation5 + $0x10] sm:$0xf]
        %v260 = vld [vmem:[#allocation5 + $0x14] sm:$0xf]
        %v261 = vld [vmem:[#allocation5 + $0x18] sm:$0xf]
        %v262 = vld [vmem:[#allocation5 + $0x1c] sm:$0xf]
        %v263 = vld [vmem:[#allocation5 + $0x20] sm:$0xf]
        %v264 = vld [vmem:[#allocation5 + $0x24] sm:$0xf]
        %v265 = vld [vmem:[#allocation5 + $0x28] sm:$0xf]
        %v266 = vld [vmem:[#allocation5 + $0x2c] sm:$0xf]
        %v267 = vld [vmem:[#allocation5 + $0x30] sm:$0xf]
        %v268 = vld [vmem:[#allocation5 + $0x34] sm:$0xf]
        %v269 = vld [vmem:[#allocation5 + $0x38] sm:$0xf]
        %v270 = vld [vmem:[#allocation5 + $0x3c] sm:$0xf]
        %v271 = vld [vmem:[%s2] sm:$0x1]
        %v273 = vlaneseq
        %v274 = vshrl.u32 %v273, 7
        %v275 = vsub.s32 0, %v274
        %v276 = vrot.slane %v271, %v275
        %v294 = vunpack.c.l.b16 %v255
        %v295 = vunpack.c.l.b16 %v256
        %v296 = vunpack.c.l.b16 %v257
        %v297 = vunpack.c.l.b16 %v258
        %v298 = vunpack.c.l.b16 %v259
        %v299 = vunpack.c.l.b16 %v260
        %v300 = vunpack.c.l.b16 %v261
        %v301 = vunpack.c.l.b16 %v262
        %v302 = vunpack.c.l.b16 %v263
        %v303 = vunpack.c.l.b16 %v264
        %v304 = vunpack.c.l.b16 %v265
        %v305 = vunpack.c.l.b16 %v266
        %v306 = vunpack.c.l.b16 %v267
        %v307 = vunpack.c.l.b16 %v268
        %v308 = vunpack.c.l.b16 %v269
        %v309 = vunpack.c.l.b16 %v270
        %v310 = vpack.c.b16 %v295, %v294
        %v311 = vpack.c.b16 %v297, %v296
        %v312 = vpack.c.b16 %v299, %v298
        %v313 = vpack.c.b16 %v301, %v300
        %v314 = vpack.c.b16 %v303, %v302
        %v315 = vpack.c.b16 %v305, %v304
        %v316 = vpack.c.b16 %v307, %v306
        %v317 = vpack.c.b16 %v309, %v308
        %326 = vmatprep.subr.bf16.mxu0 0
        %327 = vmatpush1.bf16.msra.mxu0 %v317
        %328 = vmatprep.subr.bf16.mxu0 0
        %329 = vmatpush1.bf16.msra.mxu0 %v316
        %330 = vmatprep.subr.bf16.mxu0 0
        %331 = vmatpush1.bf16.msra.mxu0 %v315
        %332 = vmatprep.subr.bf16.mxu0 0
        %333 = vmatpush1.bf16.msra.mxu0 %v314
        %334 = vmatprep.subr.bf16.mxu0 0
        %335 = vmatpush1.bf16.msra.mxu0 %v313
        %336 = vmatprep.subr.bf16.mxu0 0
        %337 = vmatpush1.bf16.msra.mxu0 %v312
        %338 = vmatprep.subr.bf16.mxu0 0
        %339 = vmatpush1.bf16.msra.mxu0 %v311
        %340 = vmatprep.subr.bf16.mxu0 0
        %341 = vmatpush1.bf16.msra.mxu0 %v310
        %342 = vmatprep.subr.bf16.mxu0 0
        %343 = vmatpush2.bf16.msra.mxu0 0
        %344 = vmatprep.subr.bf16.mxu0 0
        %345 = vmatpush2.bf16.msra.mxu0 0
        %346 = vmatprep.subr.bf16.mxu0 0
        %347 = vmatpush2.bf16.msra.mxu0 0
        %348 = vmatprep.subr.bf16.mxu0 0
        %349 = vmatpush2.bf16.msra.mxu0 0
        %350 = vmatprep.subr.bf16.mxu0 0
        %351 = vmatpush2.bf16.msra.mxu0 0
        %352 = vmatprep.subr.bf16.mxu0 0
        %353 = vmatpush2.bf16.msra.mxu0 0
        %354 = vmatprep.subr.bf16.mxu0 0
        %355 = vmatpush2.bf16.msra.mxu0 0
        %356 = vmatprep.subr.bf16.mxu0 0
        %357 = vmatpush2.bf16.msra.mxu0 0
        %358 = vmatprep.mubr.bf16.mxu0 0
        %359 = vmatmul.mubr.bf16.gmra.mxu0 %v239
        %v360 = vpop.f32.mrf.mxu0
        %v361 = vadd.f32 %v276, %v360
        %v362 = vpop.f32.mrf.mxu0
        %v363 = vpop.f32.mrf.mxu0
        %v364 = vadd.f32 %v276, %v363
        %v365 = vpop.f32.mrf.mxu0
        %366 = vmatprep.mubr.bf16.mxu0 0
        %367 = vmatmul.mubr.bf16.gmra.mxu0 %v240
        %v368 = vpop.f32.mrf.mxu0
        %v369 = vadd.f32 %v276, %v368
        %v370 = vpop.f32.mrf.mxu0
        %v371 = vpop.f32.mrf.mxu0
        %v372 = vadd.f32 %v276, %v371
        %v373 = vpop.f32.mrf.mxu0
        %374 = vmatprep.mubr.bf16.mxu0 0
        %375 = vmatmul.mubr.bf16.gmra.mxu0 %v241
        %v376 = vpop.f32.mrf.mxu0
        %v377 = vadd.f32 %v276, %v376
        %v378 = vpop.f32.mrf.mxu0
        %v379 = vpop.f32.mrf.mxu0
        %v380 = vadd.f32 %v276, %v379
        %v381 = vpop.f32.mrf.mxu0
        %382 = vmatprep.mubr.bf16.mxu0 0
        %383 = vmatmul.mubr.bf16.gmra.mxu0 %v242
        %v384 = vpop.f32.mrf.mxu0
        %v385 = vadd.f32 %v276, %v384
        %v386 = vpop.f32.mrf.mxu0
        %v387 = vpop.f32.mrf.mxu0
        %v388 = vadd.f32 %v276, %v387
        %v389 = vpop.f32.mrf.mxu0
        %390 = vmatprep.mubr.bf16.mxu0 0
        %391 = vmatmul.mubr.bf16.gmra.mxu0 %v243
        %v392 = vpop.f32.mrf.mxu0
        %v393 = vadd.f32 %v276, %v392
        %v394 = vpop.f32.mrf.mxu0
        %v395 = vpop.f32.mrf.mxu0
        %v396 = vadd.f32 %v276, %v395
        %v397 = vpop.f32.mrf.mxu0
        %398 = vmatprep.mubr.bf16.mxu0 0
        %399 = vmatmul.mubr.bf16.gmra.mxu0 %v244
        %v400 = vpop.f32.mrf.mxu0
        %v401 = vadd.f32 %v276, %v400
        %v402 = vpop.f32.mrf.mxu0
        %v403 = vpop.f32.mrf.mxu0
        %v404 = vadd.f32 %v276, %v403
        %v405 = vpop.f32.mrf.mxu0
        %406 = vmatprep.mubr.bf16.mxu0 0
        %407 = vmatmul.mubr.bf16.gmra.mxu0 %v245
        %v408 = vpop.f32.mrf.mxu0
        %v409 = vadd.f32 %v276, %v408
        %v410 = vpop.f32.mrf.mxu0
        %v411 = vpop.f32.mrf.mxu0
        %v412 = vadd.f32 %v276, %v411
        %v413 = vpop.f32.mrf.mxu0
        %414 = vmatprep.mubr.bf16.mxu0 0
        %415 = vmatmul.mubr.bf16.gmra.mxu0 %v246
        %v416 = vpop.f32.mrf.mxu0
        %v417 = vadd.f32 %v276, %v416
        %v418 = vpop.f32.mrf.mxu0
        %v419 = vpop.f32.mrf.mxu0
        %v420 = vadd.f32 %v276, %v419
        %v421 = vpop.f32.mrf.mxu0
        %422 = vmatprep.mubr.bf16.mxu0 0
        %423 = vmatmul.mubr.bf16.gmra.mxu0 %v247
        %v424 = vpop.f32.mrf.mxu0
        %v425 = vadd.f32 %v276, %v424
        %v426 = vpop.f32.mrf.mxu0
        %v427 = vpop.f32.mrf.mxu0
        %v428 = vadd.f32 %v276, %v427
        %v429 = vpop.f32.mrf.mxu0
        %430 = vmatprep.mubr.bf16.mxu0 0
        %431 = vmatmul.mubr.bf16.gmra.mxu0 %v248
        %v432 = vpop.f32.mrf.mxu0
        %v433 = vadd.f32 %v276, %v432
        %v434 = vpop.f32.mrf.mxu0
        %v435 = vpop.f32.mrf.mxu0
        %v436 = vadd.f32 %v276, %v435
        %v437 = vpop.f32.mrf.mxu0
        %438 = vmatprep.mubr.bf16.mxu0 0
        %439 = vmatmul.mubr.bf16.gmra.mxu0 %v249
        %v440 = vpop.f32.mrf.mxu0
        %v441 = vadd.f32 %v276, %v440
        %v442 = vpop.f32.mrf.mxu0
        %v443 = vpop.f32.mrf.mxu0
        %v444 = vadd.f32 %v276, %v443
        %v445 = vpop.f32.mrf.mxu0
        %446 = vmatprep.mubr.bf16.mxu0 0
        %447 = vmatmul.mubr.bf16.gmra.mxu0 %v250
        %v448 = vpop.f32.mrf.mxu0
        %v449 = vadd.f32 %v276, %v448
        %v450 = vpop.f32.mrf.mxu0
        %v451 = vpop.f32.mrf.mxu0
        %v452 = vadd.f32 %v276, %v451
        %v453 = vpop.f32.mrf.mxu0
        %454 = vmatprep.mubr.bf16.mxu0 0
        %455 = vmatmul.mubr.bf16.gmra.mxu0 %v251
        %v456 = vpop.f32.mrf.mxu0
        %v457 = vadd.f32 %v276, %v456
        %v458 = vpop.f32.mrf.mxu0
        %v459 = vpop.f32.mrf.mxu0
        %v460 = vadd.f32 %v276, %v459
        %v461 = vpop.f32.mrf.mxu0
        %462 = vmatprep.mubr.bf16.mxu0 0
        %463 = vmatmul.mubr.bf16.gmra.mxu0 %v252
        %v464 = vpop.f32.mrf.mxu0
        %v465 = vadd.f32 %v276, %v464
        %v466 = vpop.f32.mrf.mxu0
        %v467 = vpop.f32.mrf.mxu0
        %v468 = vadd.f32 %v276, %v467
        %v469 = vpop.f32.mrf.mxu0
        %470 = vmatprep.mubr.bf16.mxu0 0
        %471 = vmatmul.mubr.bf16.gmra.mxu0 %v253
        %v472 = vpop.f32.mrf.mxu0
        %v473 = vadd.f32 %v276, %v472
        %v474 = vpop.f32.mrf.mxu0
        %v475 = vpop.f32.mrf.mxu0
        %v476 = vadd.f32 %v276, %v475
        %v477 = vpop.f32.mrf.mxu0
        %478 = vmatprep.mubr.bf16.mxu0 0
        %479 = vmatmul.mubr.bf16.gmra.mxu0 %v254
        %v480 = vpop.f32.mrf.mxu0
        %v481 = vadd.f32 %v276, %v480
        %v482 = vpop.f32.mrf.mxu0
        %v483 = vpop.f32.mrf.mxu0
        %v484 = vadd.f32 %v276, %v483
        %v485 = vpop.f32.mrf.mxu0
        %486 = vdwg.mxu0
        %487 = vst [vmem:[%s203] sm:$0xff] %v361
        %488 = vst [vmem:[%s203 + $0x8] sm:$0xff] %v364
        %489 = vst [vmem:[%s203 + $0x10] sm:$0xff] %v369
        %490 = vst [vmem:[%s203 + $0x18] sm:$0xff] %v372
        %491 = vst [vmem:[%s203 + $0x20] sm:$0xff] %v377
        %492 = vst [vmem:[%s203 + $0x28] sm:$0xff] %v380
        %493 = vst [vmem:[%s203 + $0x30] sm:$0xff] %v385
        %494 = vst [vmem:[%s203 + $0x38] sm:$0xff] %v388
        %495 = vst [vmem:[%s203 + $0x40] sm:$0xff] %v393
        %496 = vst [vmem:[%s203 + $0x48] sm:$0xff] %v396
        %497 = vst [vmem:[%s203 + $0x50] sm:$0xff] %v401
        %498 = vst [vmem:[%s203 + $0x58] sm:$0xff] %v404
        %499 = vst [vmem:[%s203 + $0x60] sm:$0xff] %v409
        %500 = vst [vmem:[%s203 + $0x68] sm:$0xff] %v412
        %501 = vst [vmem:[%s203 + $0x70] sm:$0xff] %v417
        %502 = vst [vmem:[%s203 + $0x78] sm:$0xff] %v420
        %503 = vst [vmem:[%s203 + $0x80] sm:$0xff] %v425
        %504 = vst [vmem:[%s203 + $0x88] sm:$0xff] %v428
        %505 = vst [vmem:[%s203 + $0x90] sm:$0xff] %v433
        %506 = vst [vmem:[%s203 + $0x98] sm:$0xff] %v436
        %507 = vst [vmem:[%s203 + $0xa0] sm:$0xff] %v441
        %508 = vst [vmem:[%s203 + $0xa8] sm:$0xff] %v444
        %509 = vst [vmem:[%s203 + $0xb0] sm:$0xff] %v449
        %510 = vst [vmem:[%s203 + $0xb8] sm:$0xff] %v452
        %511 = vst [vmem:[%s203 + $0xc0] sm:$0xff] %v457
        %512 = vst [vmem:[%s203 + $0xc8] sm:$0xff] %v460
        %513 = vst [vmem:[%s203 + $0xd0] sm:$0xff] %v465
        %514 = vst [vmem:[%s203 + $0xd8] sm:$0xff] %v468
        %515 = vst [vmem:[%s203 + $0xe0] sm:$0xff] %v473
        %516 = vst [vmem:[%s203 + $0xe8] sm:$0xff] %v476
        %517 = vst [vmem:[%s203 + $0xf0] sm:$0xff] %v481
        %518 = vst [vmem:[%s203 + $0xf8] sm:$0xff] %v484
        %s519 = sand.u32 %s97, 1
        %s520 = scalar_lea.sflag [#allocation4], %s519
        %s521 = sand.u32 %s97, 1
        %s522 = smul.addr %s521, 256
        %s523 = scalar_lea.vmem [#allocation7], %s522
        // Predicated region
        $region41: #{tpu_custom_call.1} parent=31 // pred_check
          %p524 = pneg %p107
        $region42: #{tpu_custom_call.1} parent=31 // pred_check_branch
          %526 = sbr.rel (%p524) target = $region44
        $region43: #{tpu_custom_call.1} parent=31 // pred_region
          %s527 = smul.u32 32, %s21
          %s529 = ssub.s32 4096, 4096
          %530 = vsyncadd %s520, %s529
          %s531 = smul.addr %s527, 128
          %s532 = scalar_lea.hbm %s3, %s531
          %s533 = sshll.u32 %s523, 4
          %s534 = int_to_ptr.vmem [resolvable:$true] %s533
          %539 = dma.vmem_to_hbm [thread:$0]  %s534, 4096, %s532, %s520, 128, 128, 8
        $region44: #{tpu_custom_call.1} parent=31 // pred_fallthru
          _
      $region32: #{tpu_custom_call.1} parent=5 // pred_fallthru
        _
      %p540 = scmp.le.s32.totalorder 2, %s16
      // Predicated region
      $region45: #{tpu_custom_call.1} parent=5 // pred_check
        %p541 = pneg %p540
      $region46: #{tpu_custom_call.1} parent=5 // pred_check_branch
        %543 = sbr.rel (%p541) target = $region48
      $region47: #{tpu_custom_call.1} parent=5 // pred_region
        %s544 = ssub.s32 %s16, 2
        // Predicated region
        $region49: #{tpu_custom_call.1} parent=47 // pred_check
          %p545 = pneg %p113
        $region50: #{tpu_custom_call.1} parent=47 // pred_check_branch
          %547 = sbr.rel (%p545) target = $region52
        $region51: #{tpu_custom_call.1} parent=47 // pred_region
          %s548 = sand.u32 %s98, 1
          %s549 = scalar_lea.sflag [#allocation4], %s548
          %s550 = sand.u32 %s98, 1
          %s551 = smul.addr %s550, 256
          %s552 = scalar_lea.vmem [#allocation7], %s551
          %553 = dma.done %s549, 4096
        $region52: #{tpu_custom_call.1} parent=47 // pred_fallthru
          _
      $region48: #{tpu_custom_call.1} parent=5 // pred_fallthru
        _
    $region6: #{tpu_custom_call.1} parent=1 // loop_footer
      %s20 = sadd.s32 1, %s16
    $region7: #{tpu_custom_call.1} parent=1 // loop_footer_branch
      %15 = sbr.rel target = $region3
    $region8: #{tpu_custom_call.1} parent=1 // loop_exit
      _
    %554 = vsyncpa [#allocation3], 1
    %s555 = scalar_lea.sflag [#allocation3], 1
    %556 = vsyncpa %s555, 1
    %557 = vsyncpa [#allocation6], 1
    %558 = vsyncpa [#allocation4], 1
    %s559 = scalar_lea.sflag [#allocation4], 1
    %560 = vsyncpa %s559, 1

</llo_original>
